<compile_context>
chip_gen: v7x
topology: tpu7x:2x2x1
jax: 0.10.0
libtpu: 0.0.40
codegen_flags: <defaults>
</compile_context>

<pallas_src>
import math

import jax
import jax.numpy as jnp
from jax import lax
from jax.experimental import pallas as pl
from jax.experimental.pallas import tpu as pltpu


def quartznet_block_kernel(
    x_ref,      # (1, Cin, T)     VMEM   input block for batch b
    dw1_ref,    # (Cin, K)        VMEM   depthwise weights, TDC 1
    db1_ref,    # (Cin, 1)        VMEM   depthwise bias,    TDC 1
    pw1_ref,    # (Cout, Cin)     VMEM   pointwise weights, TDC 1
    pb1_ref,    # (Cout, 1)       VMEM
    rw1_ref,    # (Cout, Cin)     VMEM   residual 1x1 (BN folded), TDC 1
    rb1_ref,    # (Cout, 1)       VMEM
    dw2_ref,    # (Cout, K)       VMEM   depthwise weights, TDC 2
    db2_ref,    # (Cout, 1)       VMEM
    pw2_ref,    # (Cout, Cout)    VMEM
    pb2_ref,    # (Cout, 1)       VMEM
    rw2_ref,    # (Cout, Cin)     VMEM   residual 1x1 (BN folded), TDC 2
    rb2_ref,    # (Cout, 1)       VMEM
    out_ref,    # (1, Cout, T)    VMEM   output block for batch b
    buf1_ref,   # (Cin,  T+2*pad) VMEM scratch (zero-padded time axis)
    buf2_ref,   # (Cout, T+2*pad) VMEM scratch
):
    T = x_ref.shape[2]
    K = dw1_ref.shape[1]
    pad = (K - 1) // 2

    x = x_ref[0]                                              # (Cin, T)

    def depthwise(buf_ref, inp, w_ref, b_ref):
        # 'same'-padded depthwise conv along T:
        #   out[c, t] = b[c] + sum_k w[c, k] * inp[c, t + k - pad]
        buf_ref[...] = jnp.zeros(buf_ref.shape, jnp.float32)
        buf_ref[:, pad:pad + T] = inp
        acc = buf_ref[:, 0:T] * w_ref[:, 0:1]
        for k in range(1, K):                                 # K small & static
            acc = acc + buf_ref[:, k:k + T] * w_ref[:, k:k + 1]
        return acc + b_ref[...]

    # ---------------- TDC 1: input = x, origin = x ----------------
    dep1 = depthwise(buf1_ref, x, dw1_ref, db1_ref)           # (Cin, T)
    main1 = jnp.dot(pw1_ref[...], dep1,
                    preferred_element_type=jnp.float32) + pb1_ref[...]
    res1 = jnp.dot(rw1_ref[...], x,
                   preferred_element_type=jnp.float32) + rb1_ref[...]
    h1 = jnp.maximum(main1 + res1, 0.0)                       # ReLU; dropout = id

    # ---------------- TDC 2: input = h1, origin = x ----------------
    dep2 = depthwise(buf2_ref, h1, dw2_ref, db2_ref)          # (Cout, T)
    main2 = jnp.dot(pw2_ref[...], dep2,
                    preferred_element_type=jnp.float32) + pb2_ref[...]
    res2 = jnp.dot(rw2_ref[...], x,
                   preferred_element_type=jnp.float32) + rb2_ref[...]
    out_ref[0] = jnp.maximum(main2 + res2, 0.0)


class QuartzNetBlockPallas:
    """JAX/Pallas inference-mode equivalent of the PyTorch QuartzNetBlock."""

    BN_EPS = 1e-5

    def __init__(self, in_channels, out_channels, kernel_size, dropout_p, key,
                 blocks=2):
        assert blocks > 0
        assert kernel_size % 2 == 1, "padding='same' implemented for odd kernel_size"
        self.cin = in_channels
        self.cout = out_channels
        self.k = kernel_size
        self.dropout_p = dropout_p  # identity at inference

        keys = iter(jax.random.split(key, 24))

        def u(shape, bound):
            return jax.random.uniform(next(keys), shape, jnp.float32, -bound, bound)

        kb = 1.0 / math.sqrt(kernel_size)      # depthwise fan_in = K (groups=C)
        pin = 1.0 / math.sqrt(in_channels)     # pointwise fan_in = Cin
        pout = 1.0 / math.sqrt(out_channels)

        # ---- TDC 1 (input = x, origin = x) ----
        self.dw1 = u((in_channels, kernel_size), kb)
        self.db1 = u((in_channels,), kb)
        self.pw1 = u((out_channels, in_channels), pin)
        self.pb1 = u((out_channels,), pin)
        self.rw1 = u((out_channels, in_channels), pin)
        self.rb1 = u((out_channels,), pin)
        self.bn1_gamma = 1.0 + 0.1 * jax.random.normal(next(keys), (out_channels,), jnp.float32)
        self.bn1_beta = 0.1 * jax.random.normal(next(keys), (out_channels,), jnp.float32)
        self.bn1_mean = 0.1 * jax.random.normal(next(keys), (out_channels,), jnp.float32)
        self.bn1_var = 1.0 + 0.1 * jnp.abs(jax.random.normal(next(keys), (out_channels,), jnp.float32))

        # ---- TDC 2 (input = h1, origin = x) ----
        self.dw2 = u((out_channels, kernel_size), kb)
        self.db2 = u((out_channels,), kb)
        self.pw2 = u((out_channels, out_channels), pout)
        self.pb2 = u((out_channels,), pout)
        self.rw2 = u((out_channels, in_channels), pin)
        self.rb2 = u((out_channels,), pin)
        self.bn2_gamma = 1.0 + 0.1 * jax.random.normal(next(keys), (out_channels,), jnp.float32)
        self.bn2_beta = 0.1 * jax.random.normal(next(keys), (out_channels,), jnp.float32)
        self.bn2_mean = 0.1 * jax.random.normal(next(keys), (out_channels,), jnp.float32)
        self.bn2_var = 1.0 + 0.1 * jnp.abs(jax.random.normal(next(keys), (out_channels,), jnp.float32))

    @staticmethod
    def _fold_bn(w, b, gamma, beta, mean, var, eps):
        # BN(conv(x)) == conv_scaled(x) + shifted_bias   (inference-mode BN)
        scale = gamma / jnp.sqrt(var + eps)
        return w * scale[:, None], b * scale + beta - scale * mean

    def __call__(self, x):
        # x: (B, Cin, T) float32, same layout as the PyTorch module.
        B, cin, T = x.shape
        assert cin == self.cin
        cout, K = self.cout, self.k
        pad = (K - 1) // 2

        rw1f, rb1f = self._fold_bn(self.rw1, self.rb1, self.bn1_gamma,
                                   self.bn1_beta, self.bn1_mean, self.bn1_var,
                                   self.BN_EPS)
        rw2f, rb2f = self._fold_bn(self.rw2, self.rb2, self.bn2_gamma,
                                   self.bn2_beta, self.bn2_mean, self.bn2_var,
                                   self.BN_EPS)

        col = lambda v: v.reshape(-1, 1)  # biases as (C, 1) columns

        def full2d(shape):
            return pl.BlockSpec(shape, lambda b: (0, 0))

        grid_spec = pltpu.PrefetchScalarGridSpec(
            num_scalar_prefetch=0,
            grid=(B,),
            in_specs=[
                pl.BlockSpec((1, cin, T), lambda b: (b, 0, 0)),
                full2d((cin, K)), full2d((cin, 1)),
                full2d((cout, cin)), full2d((cout, 1)),
                full2d((cout, cin)), full2d((cout, 1)),
                full2d((cout, K)), full2d((cout, 1)),
                full2d((cout, cout)), full2d((cout, 1)),
                full2d((cout, cin)), full2d((cout, 1)),
            ],
            out_specs=pl.BlockSpec((1, cout, T), lambda b: (b, 0, 0)),
            scratch_shapes=[
                pltpu.VMEM((cin, T + 2 * pad), jnp.float32),
                pltpu.VMEM((cout, T + 2 * pad), jnp.float32),
            ],
        )

        return pl.pallas_call(
            quartznet_block_kernel,
            out_shape=jax.ShapeDtypeStruct((B, cout, T), jnp.float32),
            grid_spec=grid_spec,
            compiler_params=pltpu.CompilerParams(
                dimension_semantics=("parallel",)),
        )(x.astype(jnp.float32),
          self.dw1, col(self.db1), self.pw1, col(self.pb1), rw1f, col(rb1f),
          self.dw2, col(self.db2), self.pw2, col(self.pb2), rw2f, col(rb2f))


def _reference(m: QuartzNetBlockPallas, x):
    """Pure-JAX reference replicating the PyTorch math (unfolded BN)."""
    eps = m.BN_EPS
    pad = (m.k - 1) // 2
    HI = lax.Precision.HIGHEST

    def depthwise(inp, w, b):                       # inp (B,C,T), w (C,K), b (C,)
        _, _, T = inp.shape
        xp = jnp.pad(inp, ((0, 0), (0, 0), (pad, pad)))
        out = jnp.zeros_like(inp)
        for k in range(m.k):
            out = out + xp[:, :, k:k + T] * w[None, :, k:k + 1]
        return out + b[None, :, None]

    def pointwise(inp, w, b):
        return jnp.einsum('oi,bit->bot', w, inp, precision=HI) + b[None, :, None]

    def bn(inp, gamma, beta, mean, var):
        s = gamma / jnp.sqrt(var + eps)
        return inp * s[None, :, None] + (beta - s * mean)[None, :, None]

    res1 = bn(pointwise(x, m.rw1, m.rb1),
              m.bn1_gamma, m.bn1_beta, m.bn1_mean, m.bn1_var)
    h1 = jax.nn.relu(pointwise(depthwise(x, m.dw1, m.db1), m.pw1, m.pb1) + res1)
    res2 = bn(pointwise(x, m.rw2, m.rb2),
              m.bn2_gamma, m.bn2_beta, m.bn2_mean, m.bn2_var)
    out = jax.nn.relu(pointwise(depthwise(h1, m.dw2, m.db2), m.pw2, m.pb2) + res2)
    return out


if __name__ == "__main__":
    B, Cin, Cout, T, K = 2, 4, 8, 16, 3
    key = jax.random.PRNGKey(0)
    k_param, k_x = jax.random.split(key)

    block = QuartzNetBlockPallas(in_channels=Cin, out_channels=Cout,
                                 kernel_size=K, dropout_p=0.1, key=k_param)
    x = jax.random.normal(k_x, (B, Cin, T), jnp.float32)

    out = block(x)
    jax.block_until_ready(out)

    ref = _reference(block, x)
    assert out.shape == (B, Cout, T), "bad output shape"
    assert jnp.allclose(out, ref, atol=1e-3, rtol=1e-3), "QuartzNetBlock mismatch"

    print("KERNEL_OK")
</pallas_src>

<mosaic_0001>
module attributes {stable_mosaic.version = 11 : i64} {
  func.func @quartznet_block_kernel(%arg0: i32, %arg1: memref<1x4x16xf32, #tpu.memory_space<vmem>>, %arg2: memref<4x3xf32, #tpu.memory_space<vmem>>, %arg3: memref<4x1xf32, #tpu.memory_space<vmem>>, %arg4: memref<8x4xf32, #tpu.memory_space<vmem>>, %arg5: memref<8x1xf32, #tpu.memory_space<vmem>>, %arg6: memref<8x4xf32, #tpu.memory_space<vmem>>, %arg7: memref<8x1xf32, #tpu.memory_space<vmem>>, %arg8: memref<8x3xf32, #tpu.memory_space<vmem>>, %arg9: memref<8x1xf32, #tpu.memory_space<vmem>>, %arg10: memref<8x8xf32, #tpu.memory_space<vmem>>, %arg11: memref<8x1xf32, #tpu.memory_space<vmem>>, %arg12: memref<8x4xf32, #tpu.memory_space<vmem>>, %arg13: memref<8x1xf32, #tpu.memory_space<vmem>>, %arg14: memref<1x8x16xf32, #tpu.memory_space<vmem>>, %arg15: memref<4x18xf32, #tpu.memory_space<vmem>>, %arg16: memref<8x18xf32, #tpu.memory_space<vmem>>) attributes {dimension_semantics = [#tpu.dimension_semantics<parallel>], iteration_bounds = array<i64: 2>, scalar_prefetch = 0 : i64, scratch_operands = 2 : i64, tpu.core_type = #tpu.core_type<tc>, window_params = [{transform_indices = @transform_0, window_bounds = array<i64: 1, 4, 16>}, {pipeline_mode = #tpu.pipeline_mode<synchronous>, transform_indices = @transform_1, window_bounds = array<i64: 4, 3>}, {pipeline_mode = #tpu.pipeline_mode<synchronous>, transform_indices = @transform_2, window_bounds = array<i64: 4, 1>}, {pipeline_mode = #tpu.pipeline_mode<synchronous>, transform_indices = @transform_3, window_bounds = array<i64: 8, 4>}, {pipeline_mode = #tpu.pipeline_mode<synchronous>, transform_indices = @transform_4, window_bounds = array<i64: 8, 1>}, {pipeline_mode = #tpu.pipeline_mode<synchronous>, transform_indices = @transform_5, window_bounds = array<i64: 8, 4>}, {pipeline_mode = #tpu.pipeline_mode<synchronous>, transform_indices = @transform_6, window_bounds = array<i64: 8, 1>}, {pipeline_mode = #tpu.pipeline_mode<synchronous>, transform_indices = @transform_7, window_bounds = array<i64: 8, 3>}, {pipeline_mode = #tpu.pipeline_mode<synchronous>, transform_indices = @transform_8, window_bounds = array<i64: 8, 1>}, {pipeline_mode = #tpu.pipeline_mode<synchronous>, transform_indices = @transform_9, window_bounds = array<i64: 8, 8>}, {pipeline_mode = #tpu.pipeline_mode<synchronous>, transform_indices = @transform_10, window_bounds = array<i64: 8, 1>}, {pipeline_mode = #tpu.pipeline_mode<synchronous>, transform_indices = @transform_11, window_bounds = array<i64: 8, 4>}, {pipeline_mode = #tpu.pipeline_mode<synchronous>, transform_indices = @transform_12, window_bounds = array<i64: 8, 1>}, {transform_indices = @transform_13, window_bounds = array<i64: 1, 8, 16>}]} {
    %c0 = arith.constant 0 : index
    %c0_0 = arith.constant 0 : index
    %c0_1 = arith.constant 0 : index
    %0 = vector.load %arg1[%c0, %c0_0, %c0_1] : memref<1x4x16xf32, #tpu.memory_space<vmem>>, vector<1x4x16xf32>
    %1 = vector.shape_cast %0 : vector<1x4x16xf32> to vector<4x16xf32>
    %cst = arith.constant 0.000000e+00 : f32
    %2 = vector.broadcast %cst : f32 to vector<4x18xf32>
    %c0_2 = arith.constant 0 : index
    %c0_3 = arith.constant 0 : index
    %3 = vector.load %arg15[%c0_2, %c0_3] : memref<4x18xf32, #tpu.memory_space<vmem>>, vector<4x18xf32>
    tpu.vector_store %arg15[%c0_2, %c0_3], %2 {strides = array<i32>} : memref<4x18xf32, #tpu.memory_space<vmem>>, vector<4x18xf32>,
    %c0_4 = arith.constant 0 : index
    %c1 = arith.constant 1 : index
    %4 = vector.load %arg15[%c0_4, %c1] : memref<4x18xf32, #tpu.memory_space<vmem>>, vector<4x16xf32>
    tpu.vector_store %arg15[%c0_4, %c1], %1 {strides = array<i32>} : memref<4x18xf32, #tpu.memory_space<vmem>>, vector<4x16xf32>,
    %c0_5 = arith.constant 0 : index
    %c0_6 = arith.constant 0 : index
    %5 = vector.load %arg15[%c0_5, %c0_6] : memref<4x18xf32, #tpu.memory_space<vmem>>, vector<4x16xf32>
    %c0_7 = arith.constant 0 : index
    %c0_8 = arith.constant 0 : index
    %6 = vector.load %arg2[%c0_7, %c0_8] : memref<4x3xf32, #tpu.memory_space<vmem>>, vector<4x1xf32>
    %7 = vector.broadcast %6 : vector<4x1xf32> to vector<4x16xf32>
    %8 = arith.mulf %5, %7 : vector<4x16xf32>
    %c0_9 = arith.constant 0 : index
    %c1_10 = arith.constant 1 : index
    %9 = vector.load %arg15[%c0_9, %c1_10] : memref<4x18xf32, #tpu.memory_space<vmem>>, vector<4x16xf32>
    %c0_11 = arith.constant 0 : index
    %c1_12 = arith.constant 1 : index
    %10 = vector.load %arg2[%c0_11, %c1_12] : memref<4x3xf32, #tpu.memory_space<vmem>>, vector<4x1xf32>
    %11 = vector.broadcast %10 : vector<4x1xf32> to vector<4x16xf32>
    %12 = arith.mulf %9, %11 : vector<4x16xf32>
    %13 = arith.addf %8, %12 : vector<4x16xf32>
    %c0_13 = arith.constant 0 : index
    %c2 = arith.constant 2 : index
    %14 = vector.load %arg15[%c0_13, %c2] : memref<4x18xf32, #tpu.memory_space<vmem>>, vector<4x16xf32>
    %c0_14 = arith.constant 0 : index
    %c2_15 = arith.constant 2 : index
    %15 = vector.load %arg2[%c0_14, %c2_15] : memref<4x3xf32, #tpu.memory_space<vmem>>, vector<4x1xf32>
    %16 = vector.broadcast %15 : vector<4x1xf32> to vector<4x16xf32>
    %17 = arith.mulf %14, %16 : vector<4x16xf32>
    %18 = arith.addf %13, %17 : vector<4x16xf32>
    %c0_16 = arith.constant 0 : index
    %c0_17 = arith.constant 0 : index
    %19 = vector.load %arg3[%c0_16, %c0_17] : memref<4x1xf32, #tpu.memory_space<vmem>>, vector<4x1xf32>
    %20 = vector.broadcast %19 : vector<4x1xf32> to vector<4x16xf32>
    %21 = arith.addf %18, %20 : vector<4x16xf32>
    %c0_18 = arith.constant 0 : index
    %c0_19 = arith.constant 0 : index
    %22 = vector.load %arg4[%c0_18, %c0_19] : memref<8x4xf32, #tpu.memory_space<vmem>>, vector<8x4xf32>
    %cst_20 = arith.constant dense<0.000000e+00> : vector<8x16xf32>
    %23 = tpu.matmul %22, %21, %cst_20 {dimension_numbers = #tpu.dot_dimension_numbers<[1], [0], [0], [1], [0, 0, 1, 1], [], []>} : vector<8x4xf32>, vector<4x16xf32>, vector<8x16xf32> -> vector<8x16xf32>
    %c0_21 = arith.constant 0 : index
    %c0_22 = arith.constant 0 : index
    %24 = vector.load %arg5[%c0_21, %c0_22] : memref<8x1xf32, #tpu.memory_space<vmem>>, vector<8x1xf32>
    %25 = vector.broadcast %24 : vector<8x1xf32> to vector<8x16xf32>
    %26 = arith.addf %23, %25 : vector<8x16xf32>
    %c0_23 = arith.constant 0 : index
    %c0_24 = arith.constant 0 : index
    %27 = vector.load %arg6[%c0_23, %c0_24] : memref<8x4xf32, #tpu.memory_space<vmem>>, vector<8x4xf32>
    %cst_25 = arith.constant dense<0.000000e+00> : vector<8x16xf32>
    %28 = tpu.matmul %27, %1, %cst_25 {dimension_numbers = #tpu.dot_dimension_numbers<[1], [0], [0], [1], [0, 0, 1, 1], [], []>} : vector<8x4xf32>, vector<4x16xf32>, vector<8x16xf32> -> vector<8x16xf32>
    %c0_26 = arith.constant 0 : index
    %c0_27 = arith.constant 0 : index
    %29 = vector.load %arg7[%c0_26, %c0_27] : memref<8x1xf32, #tpu.memory_space<vmem>>, vector<8x1xf32>
    %30 = vector.broadcast %29 : vector<8x1xf32> to vector<8x16xf32>
    %31 = arith.addf %28, %30 : vector<8x16xf32>
    %32 = arith.addf %26, %31 : vector<8x16xf32>
    %cst_28 = arith.constant 0.000000e+00 : f32
    %33 = vector.broadcast %cst_28 : f32 to vector<8x16xf32>
    %34 = arith.maximumf %32, %33 : vector<8x16xf32>
    %cst_29 = arith.constant 0.000000e+00 : f32
    %35 = vector.broadcast %cst_29 : f32 to vector<8x18xf32>
    %c0_30 = arith.constant 0 : index
    %c0_31 = arith.constant 0 : index
    %36 = vector.load %arg16[%c0_30, %c0_31] : memref<8x18xf32, #tpu.memory_space<vmem>>, vector<8x18xf32>
    tpu.vector_store %arg16[%c0_30, %c0_31], %35 {strides = array<i32>} : memref<8x18xf32, #tpu.memory_space<vmem>>, vector<8x18xf32>,
    %c0_32 = arith.constant 0 : index
    %c1_33 = arith.constant 1 : index
    %37 = vector.load %arg16[%c0_32, %c1_33] : memref<8x18xf32, #tpu.memory_space<vmem>>, vector<8x16xf32>
    tpu.vector_store %arg16[%c0_32, %c1_33], %34 {strides = array<i32>} : memref<8x18xf32, #tpu.memory_space<vmem>>, vector<8x16xf32>,
    %c0_34 = arith.constant 0 : index
    %c0_35 = arith.constant 0 : index
    %38 = vector.load %arg16[%c0_34, %c0_35] : memref<8x18xf32, #tpu.memory_space<vmem>>, vector<8x16xf32>
    %c0_36 = arith.constant 0 : index
    %c0_37 = arith.constant 0 : index
    %39 = vector.load %arg8[%c0_36, %c0_37] : memref<8x3xf32, #tpu.memory_space<vmem>>, vector<8x1xf32>
    %40 = vector.broadcast %39 : vector<8x1xf32> to vector<8x16xf32>
    %41 = arith.mulf %38, %40 : vector<8x16xf32>
    %c0_38 = arith.constant 0 : index
    %c1_39 = arith.constant 1 : index
    %42 = vector.load %arg16[%c0_38, %c1_39] : memref<8x18xf32, #tpu.memory_space<vmem>>, vector<8x16xf32>
    %c0_40 = arith.constant 0 : index
    %c1_41 = arith.constant 1 : index
    %43 = vector.load %arg8[%c0_40, %c1_41] : memref<8x3xf32, #tpu.memory_space<vmem>>, vector<8x1xf32>
    %44 = vector.broadcast %43 : vector<8x1xf32> to vector<8x16xf32>
    %45 = arith.mulf %42, %44 : vector<8x16xf32>
    %46 = arith.addf %41, %45 : vector<8x16xf32>
    %c0_42 = arith.constant 0 : index
    %c2_43 = arith.constant 2 : index
    %47 = vector.load %arg16[%c0_42, %c2_43] : memref<8x18xf32, #tpu.memory_space<vmem>>, vector<8x16xf32>
    %c0_44 = arith.constant 0 : index
    %c2_45 = arith.constant 2 : index
    %48 = vector.load %arg8[%c0_44, %c2_45] : memref<8x3xf32, #tpu.memory_space<vmem>>, vector<8x1xf32>
    %49 = vector.broadcast %48 : vector<8x1xf32> to vector<8x16xf32>
    %50 = arith.mulf %47, %49 : vector<8x16xf32>
    %51 = arith.addf %46, %50 : vector<8x16xf32>
    %c0_46 = arith.constant 0 : index
    %c0_47 = arith.constant 0 : index
    %52 = vector.load %arg9[%c0_46, %c0_47] : memref<8x1xf32, #tpu.memory_space<vmem>>, vector<8x1xf32>
    %53 = vector.broadcast %52 : vector<8x1xf32> to vector<8x16xf32>
    %54 = arith.addf %51, %53 : vector<8x16xf32>
    %c0_48 = arith.constant 0 : index
    %c0_49 = arith.constant 0 : index
    %55 = vector.load %arg10[%c0_48, %c0_49] : memref<8x8xf32, #tpu.memory_space<vmem>>, vector<8x8xf32>
    %cst_50 = arith.constant dense<0.000000e+00> : vector<8x16xf32>
    %56 = tpu.matmul %55, %54, %cst_50 {dimension_numbers = #tpu.dot_dimension_numbers<[1], [0], [0], [1], [0, 0, 1, 1], [], []>} : vector<8x8xf32>, vector<8x16xf32>, vector<8x16xf32> -> vector<8x16xf32>
    %c0_51 = arith.constant 0 : index
    %c0_52 = arith.constant 0 : index
    %57 = vector.load %arg11[%c0_51, %c0_52] : memref<8x1xf32, #tpu.memory_space<vmem>>, vector<8x1xf32>
    %58 = vector.broadcast %57 : vector<8x1xf32> to vector<8x16xf32>
    %59 = arith.addf %56, %58 : vector<8x16xf32>
    %c0_53 = arith.constant 0 : index
    %c0_54 = arith.constant 0 : index
    %60 = vector.load %arg12[%c0_53, %c0_54] : memref<8x4xf32, #tpu.memory_space<vmem>>, vector<8x4xf32>
    %cst_55 = arith.constant dense<0.000000e+00> : vector<8x16xf32>
    %61 = tpu.matmul %60, %1, %cst_55 {dimension_numbers = #tpu.dot_dimension_numbers<[1], [0], [0], [1], [0, 0, 1, 1], [], []>} : vector<8x4xf32>, vector<4x16xf32>, vector<8x16xf32> -> vector<8x16xf32>
    %c0_56 = arith.constant 0 : index
    %c0_57 = arith.constant 0 : index
    %62 = vector.load %arg13[%c0_56, %c0_57] : memref<8x1xf32, #tpu.memory_space<vmem>>, vector<8x1xf32>
    %63 = vector.broadcast %62 : vector<8x1xf32> to vector<8x16xf32>
    %64 = arith.addf %61, %63 : vector<8x16xf32>
    %65 = arith.addf %59, %64 : vector<8x16xf32>
    %cst_58 = arith.constant 0.000000e+00 : f32
    %66 = vector.broadcast %cst_58 : f32 to vector<8x16xf32>
    %67 = arith.maximumf %65, %66 : vector<8x16xf32>
    %c0_59 = arith.constant 0 : index
    %c0_60 = arith.constant 0 : index
    %c0_61 = arith.constant 0 : index
    %68 = vector.load %arg14[%c0_59, %c0_60, %c0_61] : memref<1x8x16xf32, #tpu.memory_space<vmem>>, vector<1x8x16xf32>
    %69 = vector.shape_cast %68 : vector<1x8x16xf32> to vector<8x16xf32>
    %70 = vector.shape_cast %67 : vector<8x16xf32> to vector<1x8x16xf32>
    tpu.vector_store %arg14[%c0_59, %c0_60, %c0_61], %70 {strides = array<i32>} : memref<1x8x16xf32, #tpu.memory_space<vmem>>, vector<1x8x16xf32>,
    return
  }
  func.func @transform_0(%arg0: i32) -> (i32, i32, i32) {
    %c0_i32 = arith.constant 0 : i32
    %c0_i32_0 = arith.constant 0 : i32
    %c0_i32_1 = arith.constant 0 : i32
    return %arg0, %c0_i32, %c0_i32_0 : i32, i32, i32
  }
  func.func @transform_1(%arg0: i32) -> (i32, i32) {
    %c0_i32 = arith.constant 0 : i32
    %c0_i32_0 = arith.constant 0 : i32
    %c0_i32_1 = arith.constant 0 : i32
    return %c0_i32, %c0_i32_0 : i32, i32
  }
  func.func @transform_2(%arg0: i32) -> (i32, i32) {
    %c0_i32 = arith.constant 0 : i32
    %c0_i32_0 = arith.constant 0 : i32
    %c0_i32_1 = arith.constant 0 : i32
    return %c0_i32, %c0_i32_0 : i32, i32
  }
  func.func @transform_3(%arg0: i32) -> (i32, i32) {
    %c0_i32 = arith.constant 0 : i32
    %c0_i32_0 = arith.constant 0 : i32
    %c0_i32_1 = arith.constant 0 : i32
    return %c0_i32, %c0_i32_0 : i32, i32
  }
  func.func @transform_4(%arg0: i32) -> (i32, i32) {
    %c0_i32 = arith.constant 0 : i32
    %c0_i32_0 = arith.constant 0 : i32
    %c0_i32_1 = arith.constant 0 : i32
    return %c0_i32, %c0_i32_0 : i32, i32
  }
  func.func @transform_5(%arg0: i32) -> (i32, i32) {
    %c0_i32 = arith.constant 0 : i32
    %c0_i32_0 = arith.constant 0 : i32
    %c0_i32_1 = arith.constant 0 : i32
    return %c0_i32, %c0_i32_0 : i32, i32
  }
  func.func @transform_6(%arg0: i32) -> (i32, i32) {
    %c0_i32 = arith.constant 0 : i32
    %c0_i32_0 = arith.constant 0 : i32
    %c0_i32_1 = arith.constant 0 : i32
    return %c0_i32, %c0_i32_0 : i32, i32
  }
  func.func @transform_7(%arg0: i32) -> (i32, i32) {
    %c0_i32 = arith.constant 0 : i32
    %c0_i32_0 = arith.constant 0 : i32
    %c0_i32_1 = arith.constant 0 : i32
    return %c0_i32, %c0_i32_0 : i32, i32
  }
  func.func @transform_8(%arg0: i32) -> (i32, i32) {
    %c0_i32 = arith.constant 0 : i32
    %c0_i32_0 = arith.constant 0 : i32
    %c0_i32_1 = arith.constant 0 : i32
    return %c0_i32, %c0_i32_0 : i32, i32
  }
  func.func @transform_9(%arg0: i32) -> (i32, i32) {
    %c0_i32 = arith.constant 0 : i32
    %c0_i32_0 = arith.constant 0 : i32
    %c0_i32_1 = arith.constant 0 : i32
    return %c0_i32, %c0_i32_0 : i32, i32
  }
  func.func @transform_10(%arg0: i32) -> (i32, i32) {
    %c0_i32 = arith.constant 0 : i32
    %c0_i32_0 = arith.constant 0 : i32
    %c0_i32_1 = arith.constant 0 : i32
    return %c0_i32, %c0_i32_0 : i32, i32
  }
  func.func @transform_11(%arg0: i32) -> (i32, i32) {
    %c0_i32 = arith.constant 0 : i32
    %c0_i32_0 = arith.constant 0 : i32
    %c0_i32_1 = arith.constant 0 : i32
    return %c0_i32, %c0_i32_0 : i32, i32
  }
  func.func @transform_12(%arg0: i32) -> (i32, i32) {
    %c0_i32 = arith.constant 0 : i32
    %c0_i32_0 = arith.constant 0 : i32
    %c0_i32_1 = arith.constant 0 : i32
    return %c0_i32, %c0_i32_0 : i32, i32
  }
  func.func @transform_13(%arg0: i32) -> (i32, i32, i32) {
    %c0_i32 = arith.constant 0 : i32
    %c0_i32_0 = arith.constant 0 : i32
    %c0_i32_1 = arith.constant 0 : i32
    return %arg0, %c0_i32, %c0_i32_0 : i32, i32, i32
  }
}

</mosaic_0001>

<llo_original>
// kernel: tpu_custom_call.1
$region0: #{tpu_custom_call.1}
  #allocation0 [shape = 'u32[]', space=smem, size = 0x4, offset = 0x4, fixed_abs, tag = 'smem constant byte address 0x4 - core index']
  #allocation1 [shape = 'u32[144,128]{1,0:T(1,128)}', space=vmem, size = 0x12000, scoped, tag = 'internal scratch']
  #allocation2 [shape = 'f32[4,18]{1,0:T(4,128)}', space=vmem, size = 0x800, scoped, tag = 'scratch operand']
  #allocation3 [shape = 'f32[8,18]{1,0:T(8,128)}', space=vmem, size = 0x1000, scoped, tag = 'scratch operand']
  %s0 = inlined_call_operand.vmem [shape: f32[2,4,16], index: 0, kind: input, shape index: {}]
  %s1 = inlined_call_operand.vmem [shape: f32[4,3], index: 1, kind: input, shape index: {}]
  %s2 = inlined_call_operand.vmem [shape: f32[4,1], index: 2, kind: input, shape index: {}]
  %s3 = inlined_call_operand.vmem [shape: f32[8,4], index: 3, kind: input, shape index: {}]
  %s4 = inlined_call_operand.vmem [shape: f32[8,1], index: 4, kind: input, shape index: {}]
  %s5 = inlined_call_operand.vmem [shape: f32[8,4], index: 5, kind: input, shape index: {}]
  %s6 = inlined_call_operand.vmem [shape: f32[8,1], index: 6, kind: input, shape index: {}]
  %s7 = inlined_call_operand.vmem [shape: f32[8,3], index: 7, kind: input, shape index: {}]
  %s8 = inlined_call_operand.vmem [shape: f32[8,1], index: 8, kind: input, shape index: {}]
  %s9 = inlined_call_operand.vmem [shape: f32[8,8], index: 9, kind: input, shape index: {}]
  %s10 = inlined_call_operand.vmem [shape: f32[8,1], index: 10, kind: input, shape index: {}]
  %s11 = inlined_call_operand.vmem [shape: f32[8,4], index: 11, kind: input, shape index: {}]
  %s12 = inlined_call_operand.vmem [shape: f32[8,1], index: 12, kind: input, shape index: {}]
  %s13 = inlined_call_operand.hbm [shape: f32[2,8,16], index: 13, kind: output, shape index: {}]
  %s14 = sld [smem:[#allocation0]]
  $region85: #{tpu_custom_call.1} parent=0
    _
  %s16 = ssub.s32 1, %s14
  %s17 = scalar_select 0, %s16, %s14
  $region1: #{tpu_custom_call.1} parent=0
    #allocation4 [shape = 'u8[8192]{0}', space=vmem, size = 0x2000, scoped, tag = 'output window, operand 0']
    #allocation5 [shape = 's32[2]{0}', space=sflag, size = 0x8, scoped, tag = 'scoped memory for tpu_custom_call.1']
    %18 = vsyncpa [#allocation5], 0
    %s19 = scalar_lea.sflag [#allocation5], 1
    %20 = vsyncpa %s19, 0
    loop: start=0, step=1, limit=4
    $region2: #{tpu_custom_call.1} parent=1 // loop_pre_header
      _
    $region3: #{tpu_custom_call.1} parent=1 // loop_header
      %s22 = sphi 0, %s26
      %p23 = scmp.ge.s32.totalorder %s22, 4
      %s32 = sphi 0, %s34
      %s35 = sphi 0, %s32
      %s36 = sphi 0, %s35
      %s52 = sphi 0, %s36
      %s56 = sphi 0, %s56
      %s58 = sphi 0, %s56
      %s59 = sphi 0, %s58
      %s73 = sphi 0, %s59
      %s77 = sphi 0, %s77
      %s79 = sphi 0, %s77
      %s80 = sphi 0, %s79
      %s94 = sphi 0, %s80
      %s98 = sphi 0, %s98
      %s100 = sphi 0, %s98
      %s101 = sphi 0, %s100
      %s115 = sphi 0, %s101
      %s119 = sphi 0, %s119
      %s121 = sphi 0, %s119
      %s122 = sphi 0, %s121
      %s136 = sphi 0, %s122
      %s140 = sphi 0, %s140
      %s142 = sphi 0, %s140
      %s143 = sphi 0, %s142
      %s157 = sphi 0, %s143
      %s161 = sphi 0, %s161
      %s163 = sphi 0, %s161
      %s164 = sphi 0, %s163
      %s178 = sphi 0, %s164
      %s182 = sphi 0, %s182
      %s184 = sphi 0, %s182
      %s185 = sphi 0, %s184
      %s199 = sphi 0, %s185
      %s203 = sphi 0, %s203
      %s205 = sphi 0, %s203
      %s206 = sphi 0, %s205
      %s220 = sphi 0, %s206
      %s224 = sphi 0, %s224
      %s226 = sphi 0, %s224
      %s227 = sphi 0, %s226
      %s241 = sphi 0, %s227
      %s245 = sphi 0, %s245
      %s247 = sphi 0, %s245
      %s248 = sphi 0, %s247
      %s262 = sphi 0, %s248
      %s266 = sphi 0, %s266
      %s268 = sphi 0, %s266
      %s269 = sphi 0, %s268
      %s283 = sphi 0, %s269
      %s287 = sphi 0, %s287
      %s289 = sphi 0, %s287
      %s290 = sphi 0, %s289
      %s304 = sphi 0, %s290
      %s310 = sphi 0, %s312
      %s313 = sphi 0, %s310
      %s314 = sphi 0, %s313
      %s330 = sphi 0, %s314
    $region4: #{tpu_custom_call.1} parent=1 // loop_header_branch
      %25 = sbr.rel (%p23) target = $region8
    $region5: #{tpu_custom_call.1} parent=1 // loop_body
      %s27 = ssub.s32 %s22, 1
      %s28 = ssub.s32 %s22, 2
      %s29 = sadd.s32 %s22, 1
      %s30 = ssub.s32 %s22, %s29
      %p31 = scmp.eq.s32.totalorder %s30, 0
      %s33 = sadd.s32 %s32, 1
      %s34 = scalar_select %p31, %s32, %s33
      %p37 = pneg %p31
      %p38 = scmp.eq.s32.totalorder %s22, 1
      %p39 = por %p37, %p38
      %p40 = scmp.ne.s32.totalorder %s32, %s35
      %p41 = scmp.eq.s32.totalorder %s22, 0
      %p42 = por %p40, %p41
      %p43 = scmp.ne.s32.totalorder %s32, %s35
      %p44 = scmp.eq.s32.totalorder %s27, 1
      %p45 = por %p43, %p44
      %p46 = scmp.ne.s32.totalorder %s35, %s36
      %p47 = scmp.eq.s32.totalorder %s27, 0
      %p48 = por %p46, %p47
      %p49 = scmp.ne.s32.totalorder %s35, %s36
      %p50 = scmp.eq.s32.totalorder %s28, 1
      %p51 = por %p49, %p50
      %p53 = scmp.ne.s32.totalorder %s36, %s52
      %p54 = scmp.eq.s32.totalorder %s28, 0
      %p55 = por %p53, %p54
      %s57 = sadd.s32 %s56, 1
      %p60 = scmp.eq.s32.totalorder %s22, 1
      %p61 = scmp.ne.s32.totalorder %s56, %s58
      %p62 = scmp.eq.s32.totalorder %s22, 0
      %p63 = por %p61, %p62
      %p64 = scmp.ne.s32.totalorder %s56, %s58
      %p65 = scmp.eq.s32.totalorder %s27, 1
      %p66 = por %p64, %p65
      %p67 = scmp.ne.s32.totalorder %s58, %s59
      %p68 = scmp.eq.s32.totalorder %s27, 0
      %p69 = por %p67, %p68
      %p70 = scmp.ne.s32.totalorder %s58, %s59
      %p71 = scmp.eq.s32.totalorder %s28, 1
      %p72 = por %p70, %p71
      %p74 = scmp.ne.s32.totalorder %s59, %s73
      %p75 = scmp.eq.s32.totalorder %s28, 0
      %p76 = por %p74, %p75
      %s78 = sadd.s32 %s77, 1
      %p81 = scmp.eq.s32.totalorder %s22, 1
      %p82 = scmp.ne.s32.totalorder %s77, %s79
      %p83 = scmp.eq.s32.totalorder %s22, 0
      %p84 = por %p82, %p83
      %p85 = scmp.ne.s32.totalorder %s77, %s79
      %p86 = scmp.eq.s32.totalorder %s27, 1
      %p87 = por %p85, %p86
      %p88 = scmp.ne.s32.totalorder %s79, %s80
      %p89 = scmp.eq.s32.totalorder %s27, 0
      %p90 = por %p88, %p89
      %p91 = scmp.ne.s32.totalorder %s79, %s80
      %p92 = scmp.eq.s32.totalorder %s28, 1
      %p93 = por %p91, %p92
      %p95 = scmp.ne.s32.totalorder %s80, %s94
      %p96 = scmp.eq.s32.totalorder %s28, 0
      %p97 = por %p95, %p96
      %s99 = sadd.s32 %s98, 1
      %p102 = scmp.eq.s32.totalorder %s22, 1
      %p103 = scmp.ne.s32.totalorder %s98, %s100
      %p104 = scmp.eq.s32.totalorder %s22, 0
      %p105 = por %p103, %p104
      %p106 = scmp.ne.s32.totalorder %s98, %s100
      %p107 = scmp.eq.s32.totalorder %s27, 1
      %p108 = por %p106, %p107
      %p109 = scmp.ne.s32.totalorder %s100, %s101
      %p110 = scmp.eq.s32.totalorder %s27, 0
      %p111 = por %p109, %p110
      %p112 = scmp.ne.s32.totalorder %s100, %s101
      %p113 = scmp.eq.s32.totalorder %s28, 1
      %p114 = por %p112, %p113
      %p116 = scmp.ne.s32.totalorder %s101, %s115
      %p117 = scmp.eq.s32.totalorder %s28, 0
      %p118 = por %p116, %p117
      %s120 = sadd.s32 %s119, 1
      %p123 = scmp.eq.s32.totalorder %s22, 1
      %p124 = scmp.ne.s32.totalorder %s119, %s121
      %p125 = scmp.eq.s32.totalorder %s22, 0
      %p126 = por %p124, %p125
      %p127 = scmp.ne.s32.totalorder %s119, %s121
      %p128 = scmp.eq.s32.totalorder %s27, 1
      %p129 = por %p127, %p128
      %p130 = scmp.ne.s32.totalorder %s121, %s122
      %p131 = scmp.eq.s32.totalorder %s27, 0
      %p132 = por %p130, %p131
      %p133 = scmp.ne.s32.totalorder %s121, %s122
      %p134 = scmp.eq.s32.totalorder %s28, 1
      %p135 = por %p133, %p134
      %p137 = scmp.ne.s32.totalorder %s122, %s136
      %p138 = scmp.eq.s32.totalorder %s28, 0
      %p139 = por %p137, %p138
      %s141 = sadd.s32 %s140, 1
      %p144 = scmp.eq.s32.totalorder %s22, 1
      %p145 = scmp.ne.s32.totalorder %s140, %s142
      %p146 = scmp.eq.s32.totalorder %s22, 0
      %p147 = por %p145, %p146
      %p148 = scmp.ne.s32.totalorder %s140, %s142
      %p149 = scmp.eq.s32.totalorder %s27, 1
      %p150 = por %p148, %p149
      %p151 = scmp.ne.s32.totalorder %s142, %s143
      %p152 = scmp.eq.s32.totalorder %s27, 0
      %p153 = por %p151, %p152
      %p154 = scmp.ne.s32.totalorder %s142, %s143
      %p155 = scmp.eq.s32.totalorder %s28, 1
      %p156 = por %p154, %p155
      %p158 = scmp.ne.s32.totalorder %s143, %s157
      %p159 = scmp.eq.s32.totalorder %s28, 0
      %p160 = por %p158, %p159
      %s162 = sadd.s32 %s161, 1
      %p165 = scmp.eq.s32.totalorder %s22, 1
      %p166 = scmp.ne.s32.totalorder %s161, %s163
      %p167 = scmp.eq.s32.totalorder %s22, 0
      %p168 = por %p166, %p167
      %p169 = scmp.ne.s32.totalorder %s161, %s163
      %p170 = scmp.eq.s32.totalorder %s27, 1
      %p171 = por %p169, %p170
      %p172 = scmp.ne.s32.totalorder %s163, %s164
      %p173 = scmp.eq.s32.totalorder %s27, 0
      %p174 = por %p172, %p173
      %p175 = scmp.ne.s32.totalorder %s163, %s164
      %p176 = scmp.eq.s32.totalorder %s28, 1
      %p177 = por %p175, %p176
      %p179 = scmp.ne.s32.totalorder %s164, %s178
      %p180 = scmp.eq.s32.totalorder %s28, 0
      %p181 = por %p179, %p180
      %s183 = sadd.s32 %s182, 1
      %p186 = scmp.eq.s32.totalorder %s22, 1
      %p187 = scmp.ne.s32.totalorder %s182, %s184
      %p188 = scmp.eq.s32.totalorder %s22, 0
      %p189 = por %p187, %p188
      %p190 = scmp.ne.s32.totalorder %s182, %s184
      %p191 = scmp.eq.s32.totalorder %s27, 1
      %p192 = por %p190, %p191
      %p193 = scmp.ne.s32.totalorder %s184, %s185
      %p194 = scmp.eq.s32.totalorder %s27, 0
      %p195 = por %p193, %p194
      %p196 = scmp.ne.s32.totalorder %s184, %s185
      %p197 = scmp.eq.s32.totalorder %s28, 1
      %p198 = por %p196, %p197
      %p200 = scmp.ne.s32.totalorder %s185, %s199
      %p201 = scmp.eq.s32.totalorder %s28, 0
      %p202 = por %p200, %p201
      %s204 = sadd.s32 %s203, 1
      %p207 = scmp.eq.s32.totalorder %s22, 1
      %p208 = scmp.ne.s32.totalorder %s203, %s205
      %p209 = scmp.eq.s32.totalorder %s22, 0
      %p210 = por %p208, %p209
      %p211 = scmp.ne.s32.totalorder %s203, %s205
      %p212 = scmp.eq.s32.totalorder %s27, 1
      %p213 = por %p211, %p212
      %p214 = scmp.ne.s32.totalorder %s205, %s206
      %p215 = scmp.eq.s32.totalorder %s27, 0
      %p216 = por %p214, %p215
      %p217 = scmp.ne.s32.totalorder %s205, %s206
      %p218 = scmp.eq.s32.totalorder %s28, 1
      %p219 = por %p217, %p218
      %p221 = scmp.ne.s32.totalorder %s206, %s220
      %p222 = scmp.eq.s32.totalorder %s28, 0
      %p223 = por %p221, %p222
      %s225 = sadd.s32 %s224, 1
      %p228 = scmp.eq.s32.totalorder %s22, 1
      %p229 = scmp.ne.s32.totalorder %s224, %s226
      %p230 = scmp.eq.s32.totalorder %s22, 0
      %p231 = por %p229, %p230
      %p232 = scmp.ne.s32.totalorder %s224, %s226
      %p233 = scmp.eq.s32.totalorder %s27, 1
      %p234 = por %p232, %p233
      %p235 = scmp.ne.s32.totalorder %s226, %s227
      %p236 = scmp.eq.s32.totalorder %s27, 0
      %p237 = por %p235, %p236
      %p238 = scmp.ne.s32.totalorder %s226, %s227
      %p239 = scmp.eq.s32.totalorder %s28, 1
      %p240 = por %p238, %p239
      %p242 = scmp.ne.s32.totalorder %s227, %s241
      %p243 = scmp.eq.s32.totalorder %s28, 0
      %p244 = por %p242, %p243
      %s246 = sadd.s32 %s245, 1
      %p249 = scmp.eq.s32.totalorder %s22, 1
      %p250 = scmp.ne.s32.totalorder %s245, %s247
      %p251 = scmp.eq.s32.totalorder %s22, 0
      %p252 = por %p250, %p251
      %p253 = scmp.ne.s32.totalorder %s245, %s247
      %p254 = scmp.eq.s32.totalorder %s27, 1
      %p255 = por %p253, %p254
      %p256 = scmp.ne.s32.totalorder %s247, %s248
      %p257 = scmp.eq.s32.totalorder %s27, 0
      %p258 = por %p256, %p257
      %p259 = scmp.ne.s32.totalorder %s247, %s248
      %p260 = scmp.eq.s32.totalorder %s28, 1
      %p261 = por %p259, %p260
      %p263 = scmp.ne.s32.totalorder %s248, %s262
      %p264 = scmp.eq.s32.totalorder %s28, 0
      %p265 = por %p263, %p264
      %s267 = sadd.s32 %s266, 1
      %p270 = scmp.eq.s32.totalorder %s22, 1
      %p271 = scmp.ne.s32.totalorder %s266, %s268
      %p272 = scmp.eq.s32.totalorder %s22, 0
      %p273 = por %p271, %p272
      %p274 = scmp.ne.s32.totalorder %s266, %s268
      %p275 = scmp.eq.s32.totalorder %s27, 1
      %p276 = por %p274, %p275
      %p277 = scmp.ne.s32.totalorder %s268, %s269
      %p278 = scmp.eq.s32.totalorder %s27, 0
      %p279 = por %p277, %p278
      %p280 = scmp.ne.s32.totalorder %s268, %s269
      %p281 = scmp.eq.s32.totalorder %s28, 1
      %p282 = por %p280, %p281
      %p284 = scmp.ne.s32.totalorder %s269, %s283
      %p285 = scmp.eq.s32.totalorder %s28, 0
      %p286 = por %p284, %p285
      %s288 = sadd.s32 %s287, 1
      %p291 = scmp.eq.s32.totalorder %s22, 1
      %p292 = scmp.ne.s32.totalorder %s287, %s289
      %p293 = scmp.eq.s32.totalorder %s22, 0
      %p294 = por %p292, %p293
      %p295 = scmp.ne.s32.totalorder %s287, %s289
      %p296 = scmp.eq.s32.totalorder %s27, 1
      %p297 = por %p295, %p296
      %p298 = scmp.ne.s32.totalorder %s289, %s290
      %p299 = scmp.eq.s32.totalorder %s27, 0
      %p300 = por %p298, %p299
      %p301 = scmp.ne.s32.totalorder %s289, %s290
      %p302 = scmp.eq.s32.totalorder %s28, 1
      %p303 = por %p301, %p302
      %p305 = scmp.ne.s32.totalorder %s290, %s304
      %p306 = scmp.eq.s32.totalorder %s28, 0
      %p307 = por %p305, %p306
      %s308 = ssub.s32 %s22, %s29
      %p309 = scmp.eq.s32.totalorder %s308, 0
      %s311 = sadd.s32 %s310, 1
      %s312 = scalar_select %p309, %s310, %s311
      %p315 = pneg %p309
      %p316 = scmp.eq.s32.totalorder %s22, 1
      %p317 = por %p315, %p316
      %p318 = scmp.ne.s32.totalorder %s310, %s313
      %p319 = scmp.eq.s32.totalorder %s22, 0
      %p320 = por %p318, %p319
      %p321 = scmp.ne.s32.totalorder %s310, %s313
      %p322 = scmp.eq.s32.totalorder %s27, 1
      %p323 = por %p321, %p322
      %p324 = scmp.ne.s32.totalorder %s313, %s314
      %p325 = scmp.eq.s32.totalorder %s27, 0
      %p326 = por %p324, %p325
      %p327 = scmp.ne.s32.totalorder %s313, %s314
      %p328 = scmp.eq.s32.totalorder %s28, 1
      %p329 = por %p327, %p328
      %p331 = scmp.ne.s32.totalorder %s314, %s330
      %p332 = scmp.eq.s32.totalorder %s28, 0
      %p333 = por %p331, %p332
      %p334 = scmp.le.s32.totalorder 1, %s22
      %p335 = scmp.lt.s32.totalorder %s22, 3
      %p336 = pnand %p334, %p335
      %p337 = pneg %p336
      // Predicated region
      $region9: #{tpu_custom_call.1} parent=5 // pred_check
        _
      $region10: #{tpu_custom_call.1} parent=5 // pred_check_branch
        %339 = sbr.rel (%p336) target = $region12
      $region11: #{tpu_custom_call.1} parent=5 // pred_region
        %s340 = ssub.s32 %s22, 1
        // Predicated region
        $region13: #{tpu_custom_call.1} parent=11 // pred_check
          %p341 = pneg %p69
        $region14: #{tpu_custom_call.1} parent=11 // pred_check_branch
          %343 = sbr.rel (%p341) target = $region16
        $region15: #{tpu_custom_call.1} parent=11 // pred_region
          _
        $region16: #{tpu_custom_call.1} parent=11 // pred_fallthru
          _
        // Predicated region
        $region17: #{tpu_custom_call.1} parent=11 // pred_check
          %p344 = pneg %p90
        $region18: #{tpu_custom_call.1} parent=11 // pred_check_branch
          %346 = sbr.rel (%p344) target = $region20
        $region19: #{tpu_custom_call.1} parent=11 // pred_region
          _
        $region20: #{tpu_custom_call.1} parent=11 // pred_fallthru
          _
        // Predicated region
        $region21: #{tpu_custom_call.1} parent=11 // pred_check
          %p347 = pneg %p111
        $region22: #{tpu_custom_call.1} parent=11 // pred_check_branch
          %349 = sbr.rel (%p347) target = $region24
        $region23: #{tpu_custom_call.1} parent=11 // pred_region
          _
        $region24: #{tpu_custom_call.1} parent=11 // pred_fallthru
          _
        // Predicated region
        $region25: #{tpu_custom_call.1} parent=11 // pred_check
          %p350 = pneg %p132
        $region26: #{tpu_custom_call.1} parent=11 // pred_check_branch
          %352 = sbr.rel (%p350) target = $region28
        $region27: #{tpu_custom_call.1} parent=11 // pred_region
          _
        $region28: #{tpu_custom_call.1} parent=11 // pred_fallthru
          _
        // Predicated region
        $region29: #{tpu_custom_call.1} parent=11 // pred_check
          %p353 = pneg %p153
        $region30: #{tpu_custom_call.1} parent=11 // pred_check_branch
          %355 = sbr.rel (%p353) target = $region32
        $region31: #{tpu_custom_call.1} parent=11 // pred_region
          _
        $region32: #{tpu_custom_call.1} parent=11 // pred_fallthru
          _
        // Predicated region
        $region33: #{tpu_custom_call.1} parent=11 // pred_check
          %p356 = pneg %p174
        $region34: #{tpu_custom_call.1} parent=11 // pred_check_branch
          %358 = sbr.rel (%p356) target = $region36
        $region35: #{tpu_custom_call.1} parent=11 // pred_region
          _
        $region36: #{tpu_custom_call.1} parent=11 // pred_fallthru
          _
        // Predicated region
        $region37: #{tpu_custom_call.1} parent=11 // pred_check
          %p359 = pneg %p195
        $region38: #{tpu_custom_call.1} parent=11 // pred_check_branch
          %361 = sbr.rel (%p359) target = $region40
        $region39: #{tpu_custom_call.1} parent=11 // pred_region
          _
        $region40: #{tpu_custom_call.1} parent=11 // pred_fallthru
          _
        // Predicated region
        $region41: #{tpu_custom_call.1} parent=11 // pred_check
          %p362 = pneg %p216
        $region42: #{tpu_custom_call.1} parent=11 // pred_check_branch
          %364 = sbr.rel (%p362) target = $region44
        $region43: #{tpu_custom_call.1} parent=11 // pred_region
          _
        $region44: #{tpu_custom_call.1} parent=11 // pred_fallthru
          _
        // Predicated region
        $region45: #{tpu_custom_call.1} parent=11 // pred_check
          %p365 = pneg %p237
        $region46: #{tpu_custom_call.1} parent=11 // pred_check_branch
          %367 = sbr.rel (%p365) target = $region48
        $region47: #{tpu_custom_call.1} parent=11 // pred_region
          _
        $region48: #{tpu_custom_call.1} parent=11 // pred_fallthru
          _
        // Predicated region
        $region49: #{tpu_custom_call.1} parent=11 // pred_check
          %p368 = pneg %p258
        $region50: #{tpu_custom_call.1} parent=11 // pred_check_branch
          %370 = sbr.rel (%p368) target = $region52
        $region51: #{tpu_custom_call.1} parent=11 // pred_region
          _
        $region52: #{tpu_custom_call.1} parent=11 // pred_fallthru
          _
        // Predicated region
        $region53: #{tpu_custom_call.1} parent=11 // pred_check
          %p371 = pneg %p279
        $region54: #{tpu_custom_call.1} parent=11 // pred_check_branch
          %373 = sbr.rel (%p371) target = $region56
        $region55: #{tpu_custom_call.1} parent=11 // pred_region
          _
        $region56: #{tpu_custom_call.1} parent=11 // pred_fallthru
          _
        // Predicated region
        $region57: #{tpu_custom_call.1} parent=11 // pred_check
          %p374 = pneg %p300
        $region58: #{tpu_custom_call.1} parent=11 // pred_check_branch
          %376 = sbr.rel (%p374) target = $region60
        $region59: #{tpu_custom_call.1} parent=11 // pred_region
          _
        $region60: #{tpu_custom_call.1} parent=11 // pred_fallthru
          _
      $region12: #{tpu_custom_call.1} parent=5 // pred_fallthru
        _
      %p377 = scmp.lt.s32.totalorder %s22, 2
      // Predicated region
      $region61: #{tpu_custom_call.1} parent=5 // pred_check
        %p378 = pneg %p377
      $region62: #{tpu_custom_call.1} parent=5 // pred_check_branch
        %380 = sbr.rel (%p378) target = $region64
      $region63: #{tpu_custom_call.1} parent=5 // pred_region
        // Predicated region
        $region65: #{tpu_custom_call.1} parent=63 // pred_check
          %p381 = pneg %p42
        $region66: #{tpu_custom_call.1} parent=63 // pred_check_branch
          %383 = sbr.rel (%p381) target = $region68
        $region67: #{tpu_custom_call.1} parent=63 // pred_region
          %p384 = scmp.lt.s32.totalorder %s22, 1
          %s385 = scalar_select %p384, %s22, 1
          %s386 = smul.addr %s385, 4
          %s387 = scalar_lea.vmem %s0, %s386
        $region68: #{tpu_custom_call.1} parent=63 // pred_fallthru
          _
      $region64: #{tpu_custom_call.1} parent=5 // pred_fallthru
        _
      %p388 = scmp.le.s32.totalorder 1, %s22
      %p389 = scmp.lt.s32.totalorder %s22, 3
      %p390 = pnand %p388, %p389
      %p391 = pneg %p390
      // Predicated region
      $region69: #{tpu_custom_call.1} parent=5 // pred_check
        _
      $region70: #{tpu_custom_call.1} parent=5 // pred_check_branch
        %393 = sbr.rel (%p390) target = $region72
      $region71: #{tpu_custom_call.1} parent=5 // pred_region
        %s394 = ssub.s32 %s22, 1
        %p395 = scmp.lt.s32.totalorder %s27, 1
        %s396 = scalar_select %p395, %s27, 1
        %s397 = smul.addr %s396, 4
        %s398 = scalar_lea.vmem %s0, %s397
        %p399 = pneg %p48
        %p400 = pneg %p45
        %p401 = pneg %p69
        %p402 = pneg %p66
        %p403 = pneg %p90
        %p404 = pneg %p87
        %p405 = pneg %p111
        %p406 = pneg %p108
        %p407 = pneg %p132
        %p408 = pneg %p129
        %p409 = pneg %p153
        %p410 = pneg %p150
        %p411 = pneg %p174
        %p412 = pneg %p171
        %p413 = pneg %p195
        %p414 = pneg %p192
        %p415 = pneg %p216
        %p416 = pneg %p213
        %p417 = pneg %p237
        %p418 = pneg %p234
        %p419 = pneg %p258
        %p420 = pneg %p255
        %p421 = pneg %p279
        %p422 = pneg %p276
        %p423 = pneg %p300
        %p424 = pneg %p297
        %p425 = pneg %p326
        %p426 = pneg %p323
        %s427 = sand.u32 %s313, 1
        %s428 = scalar_lea.sflag [#allocation5], %s427
        %s429 = sand.u32 %s313, 1
        %s430 = smul.addr %s429, 8
        %s431 = scalar_lea.vmem [#allocation4], %s430
        %p432 = scmp.lt.s32.totalorder %s27, 1
        %s433 = scalar_select %p432, %s27, 1
        %s434 = smul.addr %s433, 4
        %s435 = scalar_lea.vmem %s0, %s434
        %v436 = vld [vmem:[%s435] sm:$0xf]
        %vm437 = vcmask 142336
        %438 = vst.msk [vmem:[#allocation2] sm:$0xf] %vm437, 0.0
        %440 = vrot.lane.b32.xlu0 %v436, 1
        %v441 = vpop.permute.xlu0 %440
        %vm443 = vcmask 134152
        %444 = vst.msk [vmem:[#allocation2] sm:$0xf] %vm443, %v441
        %v445 = vld [vmem:[#allocation2] sm:$0xf]
        %v446 = vld [vmem:[%s1] sm:$0xf]
        %448 = vset.pattern.permute.xlu0 0
        %449 = vperm.xlu0 %448, %v446
        %v450 = vpop.permute.xlu0 %449
        %v452 = vmul.f32 %v445, %v450
        %453 = vset.pattern.permute.xlu0 1
        %454 = vperm.xlu0 %453, %v446
        %v455 = vpop.permute.xlu0 %454
        %v457 = vmul.f32 %v445, %v455
        %459 = vrot.lane.b32.xlu0 %v457, 127
        %v460 = vpop.permute.xlu0 %459
        %v462 = vadd.f32 %v452, %v460
        %463 = vset.pattern.permute.xlu0 2
        %464 = vperm.xlu0 %463, %v446
        %v465 = vpop.permute.xlu0 %464
        %v467 = vmul.f32 %v445, %v465
        %469 = vrot.lane.b32.xlu0 %v467, 126
        %v470 = vpop.permute.xlu0 %469
        %v472 = vadd.f32 %v462, %v470
        %v473 = vld [vmem:[%s2] sm:$0xf]
        %475 = vset.pattern.permute.xlu0 0
        %476 = vperm.xlu0 %475, %v473
        %v477 = vpop.permute.xlu0 %476
        %v479 = vadd.f32 %v472, %v477
        %v480 = vld [vmem:[%s3] sm:$0xff]
        %v481 = vld [vmem:[%s4] sm:$0xff]
        %483 = vset.pattern.permute.xlu0 0
        %484 = vperm.xlu0 %483, %v481
        %v485 = vpop.permute.xlu0 %484
        %vm487 = vcmask 31744
        %v489 = vsel %vm487, %v480, 0
        %vm491 = vcmask 1043456
        %v493 = vsel %vm491, %v479, 0
        %495 = vmatprep.subr.mxu0 0.0
        %496 = vmatpush1.msra.mxu0 %v493
        %497 = vmatprep.subr.mxu0 0.0
        %498 = vmatpush1.msra.mxu0 0.0
        %499 = vmatprep.subr.mxu0 0.0
        %500 = vmatpush1.msra.mxu0 0.0
        %501 = vmatprep.subr.mxu0 0.0
        %502 = vmatpush1.msra.mxu0 0.0
        %503 = vmatprep.subr.mxu0 0.0
        %504 = vmatpush1.msra.mxu0 0.0
        %505 = vmatprep.subr.mxu0 0.0
        %506 = vmatpush1.msra.mxu0 0.0
        %507 = vmatprep.subr.mxu0 0.0
        %508 = vmatpush1.msra.mxu0 0.0
        %509 = vmatprep.subr.mxu0 0.0
        %510 = vmatpush1.msra.mxu0 0.0
        %511 = vmatprep.subr.mxu0 0.0
        %512 = vmatpush1.msra.mxu0 0.0
        %513 = vmatprep.subr.mxu0 0.0
        %514 = vmatpush1.msra.mxu0 0.0
        %515 = vmatprep.subr.mxu0 0.0
        %516 = vmatpush1.msra.mxu0 0.0
        %517 = vmatprep.subr.mxu0 0.0
        %518 = vmatpush1.msra.mxu0 0.0
        %519 = vmatprep.subr.mxu0 0.0
        %520 = vmatpush1.msra.mxu0 0.0
        %521 = vmatprep.subr.mxu0 0.0
        %522 = vmatpush1.msra.mxu0 0.0
        %523 = vmatprep.subr.mxu0 0.0
        %524 = vmatpush1.msra.mxu0 0.0
        %525 = vmatprep.subr.mxu0 0.0
        %526 = vmatpush1.msra.mxu0 0.0
        %527 = vmatprep.subr.mxu0 0.0
        %528 = vmatpush1.msra.mxu0 0.0
        %529 = vmatprep.subr.mxu0 0.0
        %530 = vmatpush1.msra.mxu0 0.0
        %531 = vmatprep.subr.mxu0 0.0
        %532 = vmatpush1.msra.mxu0 0.0
        %533 = vmatprep.subr.mxu0 0.0
        %534 = vmatpush1.msra.mxu0 0.0
        %535 = vmatprep.subr.mxu0 0.0
        %536 = vmatpush1.msra.mxu0 0.0
        %537 = vmatprep.subr.mxu0 0.0
        %538 = vmatpush1.msra.mxu0 0.0
        %539 = vmatprep.subr.mxu0 0.0
        %540 = vmatpush1.msra.mxu0 0.0
        %541 = vmatprep.subr.mxu0 0.0
        %542 = vmatpush1.msra.mxu0 0.0
        %543 = vmatprep.subr.mxu0 0.0
        %544 = vmatpush1.msra.mxu0 0.0
        %545 = vmatprep.subr.mxu0 0.0
        %546 = vmatpush1.msra.mxu0 0.0
        %547 = vmatprep.subr.mxu0 0.0
        %548 = vmatpush1.msra.mxu0 0.0
        %549 = vmatprep.subr.mxu0 0.0
        %550 = vmatpush1.msra.mxu0 0.0
        %551 = vmatprep.subr.mxu0 0.0
        %552 = vmatpush1.msra.mxu0 0.0
        %553 = vmatprep.subr.mxu0 0.0
        %554 = vmatpush1.msra.mxu0 0.0
        %555 = vmatprep.subr.mxu0 0.0
        %556 = vmatpush1.msra.mxu0 0.0
        %557 = vmatprep.subr.mxu0 0.0
        %558 = vmatpush1.msra.mxu0 0.0
        %559 = vmatprep.mubr.f32.mxu0 0.0
        %560 = vmatmul.mubr.f32.gmra.mrb[0].mxu0 %v489
        %v561 = vpop.f32.mrb[0].mxu0
        %v562 = vadd.f32 %v485, %v561
        %v563 = vpop.f32.mrb[0].mxu0
        %564 = vdwg.mxu0
        %v565 = vld [vmem:[%s5] sm:$0xff]
        %v566 = vld [vmem:[%s6] sm:$0xff]
        %568 = vset.pattern.permute.xlu0 0
        %569 = vperm.xlu0 %568, %v566
        %v570 = vpop.permute.xlu0 %569
        %v573 = vsel %vm487, %v565, 0
        %v575 = vsel %vm491, %v436, 0
        %577 = vmatprep.subr.mxu0 0.0
        %578 = vmatpush1.msra.mxu0 %v575
        %579 = vmatprep.subr.mxu0 0.0
        %580 = vmatpush1.msra.mxu0 0.0
        %581 = vmatprep.subr.mxu0 0.0
        %582 = vmatpush1.msra.mxu0 0.0
        %583 = vmatprep.subr.mxu0 0.0
        %584 = vmatpush1.msra.mxu0 0.0
        %585 = vmatprep.subr.mxu0 0.0
        %586 = vmatpush1.msra.mxu0 0.0
        %587 = vmatprep.subr.mxu0 0.0
        %588 = vmatpush1.msra.mxu0 0.0
        %589 = vmatprep.subr.mxu0 0.0
        %590 = vmatpush1.msra.mxu0 0.0
        %591 = vmatprep.subr.mxu0 0.0
        %592 = vmatpush1.msra.mxu0 0.0
        %593 = vmatprep.subr.mxu0 0.0
        %594 = vmatpush1.msra.mxu0 0.0
        %595 = vmatprep.subr.mxu0 0.0
        %596 = vmatpush1.msra.mxu0 0.0
        %597 = vmatprep.subr.mxu0 0.0
        %598 = vmatpush1.msra.mxu0 0.0
        %599 = vmatprep.subr.mxu0 0.0
        %600 = vmatpush1.msra.mxu0 0.0
        %601 = vmatprep.subr.mxu0 0.0
        %602 = vmatpush1.msra.mxu0 0.0
        %603 = vmatprep.subr.mxu0 0.0
        %604 = vmatpush1.msra.mxu0 0.0
        %605 = vmatprep.subr.mxu0 0.0
        %606 = vmatpush1.msra.mxu0 0.0
        %607 = vmatprep.subr.mxu0 0.0
        %608 = vmatpush1.msra.mxu0 0.0
        %609 = vmatprep.subr.mxu0 0.0
        %610 = vmatpush1.msra.mxu0 0.0
        %611 = vmatprep.subr.mxu0 0.0
        %612 = vmatpush1.msra.mxu0 0.0
        %613 = vmatprep.subr.mxu0 0.0
        %614 = vmatpush1.msra.mxu0 0.0
        %615 = vmatprep.subr.mxu0 0.0
        %616 = vmatpush1.msra.mxu0 0.0
        %617 = vmatprep.subr.mxu0 0.0
        %618 = vmatpush1.msra.mxu0 0.0
        %619 = vmatprep.subr.mxu0 0.0
        %620 = vmatpush1.msra.mxu0 0.0
        %621 = vmatprep.subr.mxu0 0.0
        %622 = vmatpush1.msra.mxu0 0.0
        %623 = vmatprep.subr.mxu0 0.0
        %624 = vmatpush1.msra.mxu0 0.0
        %625 = vmatprep.subr.mxu0 0.0
        %626 = vmatpush1.msra.mxu0 0.0
        %627 = vmatprep.subr.mxu0 0.0
        %628 = vmatpush1.msra.mxu0 0.0
        %629 = vmatprep.subr.mxu0 0.0
        %630 = vmatpush1.msra.mxu0 0.0
        %631 = vmatprep.subr.mxu0 0.0
        %632 = vmatpush1.msra.mxu0 0.0
        %633 = vmatprep.subr.mxu0 0.0
        %634 = vmatpush1.msra.mxu0 0.0
        %635 = vmatprep.subr.mxu0 0.0
        %636 = vmatpush1.msra.mxu0 0.0
        %637 = vmatprep.subr.mxu0 0.0
        %638 = vmatpush1.msra.mxu0 0.0
        %639 = vmatprep.subr.mxu0 0.0
        %640 = vmatpush1.msra.mxu0 0.0
        %641 = vmatprep.mubr.f32.mxu0 0.0
        %642 = vmatmul.mubr.f32.gmra.mrb[0].mxu0 %v573
        %v643 = vpop.f32.mrb[0].mxu0
        %v644 = vadd.f32 %v570, %v643
        %v645 = vpop.f32.mrb[0].mxu0
        %646 = vdwg.mxu0
        %v647 = vadd.f32 %v562, %v644
        %v648 = vmax.f32 %v647, 0.0
        %vm649 = vcmask 146432
        %650 = vst.msk [vmem:[#allocation3] sm:$0xff] %vm649, 0.0
        %652 = vrot.lane.b32.xlu0 %v648, 1
        %v653 = vpop.permute.xlu0 %652
        %vm655 = vcmask 138248
        %656 = vst.msk [vmem:[#allocation3] sm:$0xff] %vm655, %v653
        %v657 = vld [vmem:[#allocation3] sm:$0xff]
        %v658 = vld [vmem:[%s7] sm:$0xff]
        %660 = vset.pattern.permute.xlu0 0
        %661 = vperm.xlu0 %660, %v658
        %v662 = vpop.permute.xlu0 %661
        %v664 = vmul.f32 %v657, %v662
        %665 = vset.pattern.permute.xlu0 1
        %666 = vperm.xlu0 %665, %v658
        %v667 = vpop.permute.xlu0 %666
        %v669 = vmul.f32 %v657, %v667
        %671 = vrot.lane.b32.xlu0 %v669, 127
        %v672 = vpop.permute.xlu0 %671
        %v674 = vadd.f32 %v664, %v672
        %675 = vset.pattern.permute.xlu0 2
        %676 = vperm.xlu0 %675, %v658
        %v677 = vpop.permute.xlu0 %676
        %v679 = vmul.f32 %v657, %v677
        %681 = vrot.lane.b32.xlu0 %v679, 126
        %v682 = vpop.permute.xlu0 %681
        %v684 = vadd.f32 %v674, %v682
        %v685 = vld [vmem:[%s8] sm:$0xff]
        %687 = vset.pattern.permute.xlu0 0
        %688 = vperm.xlu0 %687, %v685
        %v689 = vpop.permute.xlu0 %688
        %v691 = vadd.f32 %v684, %v689
        %v692 = vld [vmem:[%s9] sm:$0xff]
        %v693 = vld [vmem:[%s10] sm:$0xff]
        %695 = vset.pattern.permute.xlu0 0
        %696 = vperm.xlu0 %695, %v693
        %v697 = vpop.permute.xlu0 %696
        %vm699 = vcmask 64512
        %v701 = vsel %vm699, %v692, 0
        %703 = vmatprep.subr.mxu0 0.0
        %704 = vmatpush1.msra.mxu0 %v691
        %705 = vmatprep.subr.mxu0 0.0
        %706 = vmatpush1.msra.mxu0 0.0
        %707 = vmatprep.subr.mxu0 0.0
        %708 = vmatpush1.msra.mxu0 0.0
        %709 = vmatprep.subr.mxu0 0.0
        %710 = vmatpush1.msra.mxu0 0.0
        %711 = vmatprep.subr.mxu0 0.0
        %712 = vmatpush1.msra.mxu0 0.0
        %713 = vmatprep.subr.mxu0 0.0
        %714 = vmatpush1.msra.mxu0 0.0
        %715 = vmatprep.subr.mxu0 0.0
        %716 = vmatpush1.msra.mxu0 0.0
        %717 = vmatprep.subr.mxu0 0.0
        %718 = vmatpush1.msra.mxu0 0.0
        %719 = vmatprep.subr.mxu0 0.0
        %720 = vmatpush1.msra.mxu0 0.0
        %721 = vmatprep.subr.mxu0 0.0
        %722 = vmatpush1.msra.mxu0 0.0
        %723 = vmatprep.subr.mxu0 0.0
        %724 = vmatpush1.msra.mxu0 0.0
        %725 = vmatprep.subr.mxu0 0.0
        %726 = vmatpush1.msra.mxu0 0.0
        %727 = vmatprep.subr.mxu0 0.0
        %728 = vmatpush1.msra.mxu0 0.0
        %729 = vmatprep.subr.mxu0 0.0
        %730 = vmatpush1.msra.mxu0 0.0
        %731 = vmatprep.subr.mxu0 0.0
        %732 = vmatpush1.msra.mxu0 0.0
        %733 = vmatprep.subr.mxu0 0.0
        %734 = vmatpush1.msra.mxu0 0.0
        %735 = vmatprep.subr.mxu0 0.0
        %736 = vmatpush1.msra.mxu0 0.0
        %737 = vmatprep.subr.mxu0 0.0
        %738 = vmatpush1.msra.mxu0 0.0
        %739 = vmatprep.subr.mxu0 0.0
        %740 = vmatpush1.msra.mxu0 0.0
        %741 = vmatprep.subr.mxu0 0.0
        %742 = vmatpush1.msra.mxu0 0.0
        %743 = vmatprep.subr.mxu0 0.0
        %744 = vmatpush1.msra.mxu0 0.0
        %745 = vmatprep.subr.mxu0 0.0
        %746 = vmatpush1.msra.mxu0 0.0
        %747 = vmatprep.subr.mxu0 0.0
        %748 = vmatpush1.msra.mxu0 0.0
        %749 = vmatprep.subr.mxu0 0.0
        %750 = vmatpush1.msra.mxu0 0.0
        %751 = vmatprep.subr.mxu0 0.0
        %752 = vmatpush1.msra.mxu0 0.0
        %753 = vmatprep.subr.mxu0 0.0
        %754 = vmatpush1.msra.mxu0 0.0
        %755 = vmatprep.subr.mxu0 0.0
        %756 = vmatpush1.msra.mxu0 0.0
        %757 = vmatprep.subr.mxu0 0.0
        %758 = vmatpush1.msra.mxu0 0.0
        %759 = vmatprep.subr.mxu0 0.0
        %760 = vmatpush1.msra.mxu0 0.0
        %761 = vmatprep.subr.mxu0 0.0
        %762 = vmatpush1.msra.mxu0 0.0
        %763 = vmatprep.subr.mxu0 0.0
        %764 = vmatpush1.msra.mxu0 0.0
        %765 = vmatprep.subr.mxu0 0.0
        %766 = vmatpush1.msra.mxu0 0.0
        %767 = vmatprep.mubr.f32.mxu0 0.0
        %768 = vmatmul.mubr.f32.gmra.mrb[0].mxu0 %v701
        %v769 = vpop.f32.mrb[0].mxu0
        %v770 = vadd.f32 %v697, %v769
        %v771 = vpop.f32.mrb[0].mxu0
        %772 = vdwg.mxu0
        %v773 = vld [vmem:[%s11] sm:$0xff]
        %v774 = vld [vmem:[%s12] sm:$0xff]
        %776 = vset.pattern.permute.xlu0 0
        %777 = vperm.xlu0 %776, %v774
        %v778 = vpop.permute.xlu0 %777
        %v781 = vsel %vm487, %v773, 0
        %783 = vmatprep.subr.mxu0 0.0
        %784 = vmatpush1.msra.mxu0 %v575
        %785 = vmatprep.subr.mxu0 0.0
        %786 = vmatpush1.msra.mxu0 0.0
        %787 = vmatprep.subr.mxu0 0.0
        %788 = vmatpush1.msra.mxu0 0.0
        %789 = vmatprep.subr.mxu0 0.0
        %790 = vmatpush1.msra.mxu0 0.0
        %791 = vmatprep.subr.mxu0 0.0
        %792 = vmatpush1.msra.mxu0 0.0
        %793 = vmatprep.subr.mxu0 0.0
        %794 = vmatpush1.msra.mxu0 0.0
        %795 = vmatprep.subr.mxu0 0.0
        %796 = vmatpush1.msra.mxu0 0.0
        %797 = vmatprep.subr.mxu0 0.0
        %798 = vmatpush1.msra.mxu0 0.0
        %799 = vmatprep.subr.mxu0 0.0
        %800 = vmatpush1.msra.mxu0 0.0
        %801 = vmatprep.subr.mxu0 0.0
        %802 = vmatpush1.msra.mxu0 0.0
        %803 = vmatprep.subr.mxu0 0.0
        %804 = vmatpush1.msra.mxu0 0.0
        %805 = vmatprep.subr.mxu0 0.0
        %806 = vmatpush1.msra.mxu0 0.0
        %807 = vmatprep.subr.mxu0 0.0
        %808 = vmatpush1.msra.mxu0 0.0
        %809 = vmatprep.subr.mxu0 0.0
        %810 = vmatpush1.msra.mxu0 0.0
        %811 = vmatprep.subr.mxu0 0.0
        %812 = vmatpush1.msra.mxu0 0.0
        %813 = vmatprep.subr.mxu0 0.0
        %814 = vmatpush1.msra.mxu0 0.0
        %815 = vmatprep.subr.mxu0 0.0
        %816 = vmatpush1.msra.mxu0 0.0
        %817 = vmatprep.subr.mxu0 0.0
        %818 = vmatpush1.msra.mxu0 0.0
        %819 = vmatprep.subr.mxu0 0.0
        %820 = vmatpush1.msra.mxu0 0.0
        %821 = vmatprep.subr.mxu0 0.0
        %822 = vmatpush1.msra.mxu0 0.0
        %823 = vmatprep.subr.mxu0 0.0
        %824 = vmatpush1.msra.mxu0 0.0
        %825 = vmatprep.subr.mxu0 0.0
        %826 = vmatpush1.msra.mxu0 0.0
        %827 = vmatprep.subr.mxu0 0.0
        %828 = vmatpush1.msra.mxu0 0.0
        %829 = vmatprep.subr.mxu0 0.0
        %830 = vmatpush1.msra.mxu0 0.0
        %831 = vmatprep.subr.mxu0 0.0
        %832 = vmatpush1.msra.mxu0 0.0
        %833 = vmatprep.subr.mxu0 0.0
        %834 = vmatpush1.msra.mxu0 0.0
        %835 = vmatprep.subr.mxu0 0.0
        %836 = vmatpush1.msra.mxu0 0.0
        %837 = vmatprep.subr.mxu0 0.0
        %838 = vmatpush1.msra.mxu0 0.0
        %839 = vmatprep.subr.mxu0 0.0
        %840 = vmatpush1.msra.mxu0 0.0
        %841 = vmatprep.subr.mxu0 0.0
        %842 = vmatpush1.msra.mxu0 0.0
        %843 = vmatprep.subr.mxu0 0.0
        %844 = vmatpush1.msra.mxu0 0.0
        %845 = vmatprep.subr.mxu0 0.0
        %846 = vmatpush1.msra.mxu0 0.0
        %847 = vmatprep.mubr.f32.mxu0 0.0
        %848 = vmatmul.mubr.f32.gmra.mrb[0].mxu0 %v781
        %v849 = vpop.f32.mrb[0].mxu0
        %v850 = vadd.f32 %v778, %v849
        %v851 = vpop.f32.mrb[0].mxu0
        %852 = vdwg.mxu0
        %v853 = vadd.f32 %v770, %v850
        %v854 = vmax.f32 %v853, 0.0
        %vm855 = vcmask 130048
        %856 = vst.msk [vmem:[%s431] sm:$0xff] %vm855, %v854
        %s857 = sand.u32 %s313, 1
        %s858 = scalar_lea.sflag [#allocation5], %s857
        %s859 = sand.u32 %s313, 1
        %s860 = smul.addr %s859, 8
        %s861 = scalar_lea.vmem [#allocation4], %s860
        // Predicated region
        $region73: #{tpu_custom_call.1} parent=71 // pred_check
          %p862 = pneg %p323
        $region74: #{tpu_custom_call.1} parent=71 // pred_check_branch
          %864 = sbr.rel (%p862) target = $region76
        $region75: #{tpu_custom_call.1} parent=71 // pred_region
          %s866 = ssub.s32 128, 128
          %867 = vsyncadd %s858, %s866
          %s868 = smul.addr %s27, 128
          %s869 = scalar_lea.hbm %s13, %s868
          %s871 = sshll.u32 %s861, 4
          %s872 = int_to_ptr.vmem [resolvable:$true] %s871
          %874 = dma.vmem_to_hbm [thread:$0]  %s872, 128, %s869, %s858
        $region76: #{tpu_custom_call.1} parent=71 // pred_fallthru
          _
      $region72: #{tpu_custom_call.1} parent=5 // pred_fallthru
        _
      %p875 = scmp.le.s32.totalorder 2, %s22
      // Predicated region
      $region77: #{tpu_custom_call.1} parent=5 // pred_check
        %p876 = pneg %p875
      $region78: #{tpu_custom_call.1} parent=5 // pred_check_branch
        %878 = sbr.rel (%p876) target = $region80
      $region79: #{tpu_custom_call.1} parent=5 // pred_region
        %s879 = ssub.s32 %s22, 2
        // Predicated region
        $region81: #{tpu_custom_call.1} parent=79 // pred_check
          %p880 = pneg %p329
        $region82: #{tpu_custom_call.1} parent=79 // pred_check_branch
          %882 = sbr.rel (%p880) target = $region84
        $region83: #{tpu_custom_call.1} parent=79 // pred_region
          %s883 = sand.u32 %s314, 1
          %s884 = scalar_lea.sflag [#allocation5], %s883
          %s885 = sand.u32 %s314, 1
          %s886 = smul.addr %s885, 8
          %s887 = scalar_lea.vmem [#allocation4], %s886
          %888 = dma.done %s884, 128
        $region84: #{tpu_custom_call.1} parent=79 // pred_fallthru
          _
      $region80: #{tpu_custom_call.1} parent=5 // pred_fallthru
        _
    $region6: #{tpu_custom_call.1} parent=1 // loop_footer
      %s26 = sadd.s32 1, %s22
    $region7: #{tpu_custom_call.1} parent=1 // loop_footer_branch
      %21 = sbr.rel target = $region3
    $region8: #{tpu_custom_call.1} parent=1 // loop_exit
      _
    %889 = vsyncpa [#allocation5], 1
    %s890 = scalar_lea.sflag [#allocation5], 1
    %891 = vsyncpa %s890, 1

</llo_original>
